<compile_context>
chip_gen: v7x
topology: tpu7x:2x2x1
jax: 0.10.0
libtpu: 0.0.40
codegen_flags: <defaults>
</compile_context>

<pallas_src>
import functools

import jax
import jax.numpy as jnp
from jax.experimental import pallas as pl
from jax.experimental.pallas import tpu as pltpu


TILE_N = 512  # lane-tile width (multiple of 128); large tiles amortize ~600-cycle/step overhead


def _temporal_embedding_kernel(vals_ref, table_ref, out_ref, *, time_steps, n_weeks):
    """Fused dual-table gather + add as a single one-hot MXU matmul.

    vals_ref:  [2, TILE_N] f32   row 0 = day fraction, row 1 = weekday value
    table_ref: [F, K_pad]  f32   transposed fused table (cols [0,time) = day rows,
                                 cols [time, time+7) = week rows, rest zero pad)
    out_ref:   [F, TILE_N] f32   transposed (lane-dense) output tile
    """
    tile_n = out_ref.shape[-1]
    k_pad = table_ref.shape[-1]

    vals = vals_ref[...]                    # [2, TILE_N]
    day = vals[0:1, :]                      # [1, TILE_N]
    week = vals[1:2, :]                     # [1, TILE_N]

    # Truncation toward zero matches torch .type(LongTensor); clamp keeps padded /
    # out-of-range lanes inside the table (and avoids day/week row collisions).
    day_idx = jnp.clip((day * float(time_steps)).astype(jnp.int32),
                       0, time_steps - 1)                                 # [1, TILE_N]
    week_row = jnp.clip(week.astype(jnp.int32), 0, n_weeks - 1) + time_steps

    # Combined one-hot: a 1 at the day row AND at the (offset) week row.
    iota_k = jax.lax.broadcasted_iota(jnp.int32, (k_pad, tile_n), 0)
    onehot = jnp.logical_or(iota_k == day_idx,
                            iota_k == week_row).astype(jnp.float32)       # [K_pad, TILE_N]

    # [F, K_pad] @ [K_pad, TILE_N] -> [F, TILE_N]  (gather-day + gather-week + add, fused)
    out_ref[...] = jnp.dot(table_ref[...], onehot,
                           preferred_element_type=jnp.float32)


def temporal_embedding(x, time_day, time_week):
    """x: [B, T, N, C] f32, time_day: [time, F], time_week: [7, F] -> [B, F, N, 1]."""
    B, T, N, C = x.shape
    time_steps, F = time_day.shape
    n_weeks = time_week.shape[0]

    # Fused, transposed table [F, K_pad]; K padded only to a multiple of 8
    # (full-array BlockSpec -> no 128-lane requirement; smaller K_pad means
    # ~2x less one-hot VPU/store work and a smaller MXU contraction).
    k = time_steps + n_weeks
    k_pad = ((k + 7) // 8) * 8
    fused = jnp.concatenate([time_day, time_week], axis=0).astype(jnp.float32)  # [K, F]
    table_t = jnp.zeros((F, k_pad), jnp.float32).at[:, :k].set(fused.T)

    kernel = functools.partial(_temporal_embedding_kernel,
                               time_steps=time_steps, n_weeks=n_weeks)

    # Day + week channels at the last timestep: [B, N, 2].
    vals_bn2 = x[:, -1, :, 1:3].astype(jnp.float32)

    if N <= TILE_N:
        # --- Small node counts: fold batch into the lane axis. ----------------
        # Every grid step is a full 512-wide tile; no tiny per-batch steps.
        l = B * N
        l_pad = ((l + TILE_N - 1) // TILE_N) * TILE_N
        vals = jnp.transpose(vals_bn2.reshape(l, 2), (1, 0))        # [2, B*N]
        if l_pad != l:
            vals = jnp.pad(vals, ((0, 0), (0, l_pad - l)))

        out = pl.pallas_call(
            kernel,
            out_shape=jax.ShapeDtypeStruct((F, l_pad), jnp.float32),
            grid_spec=pltpu.PrefetchScalarGridSpec(
                num_scalar_prefetch=0,
                grid=(l_pad // TILE_N,),
                in_specs=[
                    pl.BlockSpec((2, TILE_N), lambda i: (0, i)),
                    # Fused table: constant index_map -> VMEM-resident across the grid.
                    pl.BlockSpec((F, k_pad), lambda i: (0, 0)),
                ],
                out_specs=pl.BlockSpec((F, TILE_N), lambda i: (0, i)),
            ),
            compiler_params=pltpu.CompilerParams(
                dimension_semantics=("parallel",)),
        )(vals, table_t)

        # [F, L_pad] -> [B, F, N, 1]   (slice padding, un-fold batch)
        return out[:, :l].reshape(F, B, N).transpose(1, 0, 2)[..., None]

    # --- Large node counts: per-batch 512-lane tiling, no wrapper transpose. ---
    n_pad = ((N + TILE_N - 1) // TILE_N) * TILE_N
    vals = jnp.transpose(vals_bn2, (0, 2, 1))                        # [B, 2, N]
    if n_pad != N:
        vals = jnp.pad(vals, ((0, 0), (0, 0), (0, n_pad - N)))

    out = pl.pallas_call(
        kernel,
        out_shape=jax.ShapeDtypeStruct((B, F, n_pad), jnp.float32),
        grid_spec=pltpu.PrefetchScalarGridSpec(
            num_scalar_prefetch=0,
            grid=(B, n_pad // TILE_N),
            in_specs=[
                pl.BlockSpec((None, 2, TILE_N), lambda b, n: (b, 0, n)),
                pl.BlockSpec((F, k_pad), lambda b, n: (0, 0)),
            ],
            out_specs=pl.BlockSpec((None, F, TILE_N), lambda b, n: (b, 0, n)),
        ),
        compiler_params=pltpu.CompilerParams(
            dimension_semantics=("parallel", "parallel")),
    )(vals, table_t)

    # [B, F, N_pad] -> [B, F, N, 1]   (slice node padding; lane-dense, no transpose)
    return out[:, :, :N][..., None]


def _reference(x, time_day, time_week, time_steps):
    d_idx = (x[:, -1, :, 1] * time_steps).astype(jnp.int32)   # [B, N]
    w_idx = x[:, -1, :, 2].astype(jnp.int32)                  # [B, N]
    emb = time_day[d_idx] + time_week[w_idx]                  # [B, N, F]
    return emb.transpose(0, 2, 1)[..., None]                  # [B, F, N, 1]


if __name__ == "__main__":
    # Small shapes consistent with the module: time=48 slots/day, features=32,
    # batch=2, seq=8, nodes=16, channels=3 (channel 1: day frac, channel 2: weekday).
    TIME, FEATURES = 48, 32
    B, T, N, C = 2, 8, 16, 3

    key = jax.random.PRNGKey(0)
    k_day, k_week, k_td, k_tw, k_rest = jax.random.split(key, 5)

    # Build x: channel 0 arbitrary signal, channel 1 in [0,1), channel 2 in {0..6}.
    x = jnp.zeros((B, T, N, C), jnp.float32)
    x = x.at[..., 0].set(jax.random.normal(k_rest, (B, T, N)))
    x = x.at[..., 1].set(jax.random.uniform(k_day, (B, T, N), minval=0.0, maxval=0.999))
    x = x.at[..., 2].set(
        jax.random.randint(k_week, (B, T, N), 0, 7).astype(jnp.float32))

    # Deterministic xavier-uniform init of the embedding tables.
    bound_d = (6.0 / (TIME + FEATURES)) ** 0.5
    bound_w = (6.0 / (7 + FEATURES)) ** 0.5
    time_day = jax.random.uniform(k_td, (TIME, FEATURES), jnp.float32,
                                  minval=-bound_d, maxval=bound_d)
    time_week = jax.random.uniform(k_tw, (7, FEATURES), jnp.float32,
                                   minval=-bound_w, maxval=bound_w)

    out = temporal_embedding(x, time_day, time_week)
    out = jax.block_until_ready(out)

    ref = _reference(x, time_day, time_week, TIME)
    assert out.shape == (B, FEATURES, N, 1), out.shape
    assert jnp.allclose(out, ref, atol=1e-5, rtol=1e-5), "mismatch vs reference"

    print("KERNEL_OK")
</pallas_src>

<mosaic_0001>
module attributes {stable_mosaic.version = 11 : i64} {
  func.func @_temporal_embedding_kernel(%arg0: i32, %arg1: memref<2x512xf32, #tpu.memory_space<vmem>>, %arg2: memref<32x56xf32, #tpu.memory_space<vmem>>, %arg3: memref<32x512xf32, #tpu.memory_space<vmem>>) attributes {dimension_semantics = [#tpu.dimension_semantics<parallel>], iteration_bounds = array<i64: 1>, scalar_prefetch = 0 : i64, scratch_operands = 0 : i64, tpu.core_type = #tpu.core_type<tc>, window_params = [{transform_indices = @transform_0, window_bounds = array<i64: 2, 512>}, {pipeline_mode = #tpu.pipeline_mode<synchronous>, transform_indices = @transform_1, window_bounds = array<i64: 32, 56>}, {transform_indices = @transform_2, window_bounds = array<i64: 32, 512>}]} {
    %c0 = arith.constant 0 : index
    %c0_0 = arith.constant 0 : index
    %0 = vector.load %arg1[%c0, %c0_0] : memref<2x512xf32, #tpu.memory_space<vmem>>, vector<2x512xf32>
    %1 = vector.extract_strided_slice %0 {offsets = [0, 0], sizes = [1, 512], strides = [1, 1]} : vector<2x512xf32> to vector<1x512xf32>
    %2 = vector.extract_strided_slice %0 {offsets = [1, 0], sizes = [1, 512], strides = [1, 1]} : vector<2x512xf32> to vector<1x512xf32>
    %cst = arith.constant 4.800000e+01 : f32
    %3 = vector.broadcast %cst : f32 to vector<1x512xf32>
    %4 = arith.mulf %1, %3 : vector<1x512xf32>
    %5 = arith.fptosi %4 : vector<1x512xf32> to vector<1x512xi32>
    %c0_i32 = arith.constant 0 : i32
    %c47_i32 = arith.constant 47 : i32
    %6 = vector.broadcast %c0_i32 : i32 to vector<1x512xi32>
    %7 = arith.maxsi %6, %5 : vector<1x512xi32>
    %8 = vector.broadcast %c47_i32 : i32 to vector<1x512xi32>
    %9 = arith.minsi %8, %7 : vector<1x512xi32>
    %10 = arith.fptosi %2 : vector<1x512xf32> to vector<1x512xi32>
    %c0_i32_1 = arith.constant 0 : i32
    %c6_i32 = arith.constant 6 : i32
    %11 = vector.broadcast %c0_i32_1 : i32 to vector<1x512xi32>
    %12 = arith.maxsi %11, %10 : vector<1x512xi32>
    %13 = vector.broadcast %c6_i32 : i32 to vector<1x512xi32>
    %14 = arith.minsi %13, %12 : vector<1x512xi32>
    %c48_i32 = arith.constant 48 : i32
    %15 = vector.broadcast %c48_i32 : i32 to vector<1x512xi32>
    %16 = arith.addi %14, %15 : vector<1x512xi32>
    %17 = tpu.iota {dimensions = array<i32: 0>} : vector<56x512xi32>
    %18 = vector.broadcast %9 : vector<1x512xi32> to vector<56x512xi32>
    %19 = arith.cmpi eq, %17, %18 : vector<56x512xi32>
    %20 = vector.broadcast %16 : vector<1x512xi32> to vector<56x512xi32>
    %21 = arith.cmpi eq, %17, %20 : vector<56x512xi32>
    %22 = arith.ori %19, %21 : vector<56x512xi1>
    %23 = arith.extui %22 : vector<56x512xi1> to vector<56x512xi32>
    %24 = arith.sitofp %23 : vector<56x512xi32> to vector<56x512xf32>
    %c0_2 = arith.constant 0 : index
    %c0_3 = arith.constant 0 : index
    %25 = vector.load %arg2[%c0_2, %c0_3] : memref<32x56xf32, #tpu.memory_space<vmem>>, vector<32x56xf32>
    %cst_4 = arith.constant dense<0.000000e+00> : vector<32x512xf32>
    %26 = tpu.matmul %25, %24, %cst_4 {dimension_numbers = #tpu.dot_dimension_numbers<[1], [0], [0], [1], [0, 0, 1, 1], [], []>} : vector<32x56xf32>, vector<56x512xf32>, vector<32x512xf32> -> vector<32x512xf32>
    %c0_5 = arith.constant 0 : index
    %c0_6 = arith.constant 0 : index
    %27 = vector.load %arg3[%c0_5, %c0_6] : memref<32x512xf32, #tpu.memory_space<vmem>>, vector<32x512xf32>
    tpu.vector_store %arg3[%c0_5, %c0_6], %26 {strides = array<i32>} : memref<32x512xf32, #tpu.memory_space<vmem>>, vector<32x512xf32>,
    return
  }
  func.func @transform_0(%arg0: i32) -> (i32, i32) {
    %c0_i32 = arith.constant 0 : i32
    %c0_i32_0 = arith.constant 0 : i32
    return %c0_i32, %arg0 : i32, i32
  }
  func.func @transform_1(%arg0: i32) -> (i32, i32) {
    %c0_i32 = arith.constant 0 : i32
    %c0_i32_0 = arith.constant 0 : i32
    %c0_i32_1 = arith.constant 0 : i32
    return %c0_i32, %c0_i32_0 : i32, i32
  }
  func.func @transform_2(%arg0: i32) -> (i32, i32) {
    %c0_i32 = arith.constant 0 : i32
    %c0_i32_0 = arith.constant 0 : i32
    return %c0_i32, %arg0 : i32, i32
  }
}

</mosaic_0001>

<llo_original>
// kernel: tpu_custom_call.1
$region0: #{tpu_custom_call.1}
  #allocation0 [shape = 'u32[]', space=smem, size = 0x4, offset = 0x4, fixed_abs, tag = 'smem constant byte address 0x4 - core index']
  #allocation1 [shape = 'u32[144,128]{1,0:T(1,128)}', space=vmem, size = 0x12000, scoped, tag = 'internal scratch']
  %s0 = inlined_call_operand.hbm [shape: f32[2,512], index: 0, kind: input, shape index: {}]
  %s1 = inlined_call_operand.hbm [shape: f32[32,56], index: 1, kind: input, shape index: {}]
  %s2 = inlined_call_operand.hbm [shape: f32[32,512], index: 2, kind: output, shape index: {}]
  %s3 = sld [smem:[#allocation0]]
  $region26: #{tpu_custom_call.1} parent=0
    _
  %s5 = ssub.s32 1, %s3
  %s6 = scalar_select 0, %s5, %s3
  $region1: #{tpu_custom_call.1} parent=0
    #allocation2 [shape = 'u8[4096]{0}', space=vmem, size = 0x1000, scoped, tag = 'input window, operand 0, single buffered']
    #allocation3 [shape = 's32[1]{0}', space=sflag, size = 0x4, scoped, tag = 'scoped memory for tpu_custom_call.1']
    #allocation4 [shape = 's32[1]{0}', space=sflag, size = 0x4, scoped, tag = 'scoped memory for tpu_custom_call.1']
    #allocation5 [shape = 'u8[16384]{0}', space=vmem, size = 0x4000, scoped, tag = 'input window, operand 1, single buffered']
    #allocation6 [shape = 's32[1]{0}', space=sflag, size = 0x4, scoped, tag = 'scoped memory for tpu_custom_call.1']
    #allocation7 [shape = 'u8[65536]{0}', space=vmem, size = 0x10000, scoped, tag = 'output window, operand 0, single buffered']
    %7 = vsyncpa [#allocation3], 0
    %8 = vsyncpa [#allocation6], 0
    %9 = vsyncpa [#allocation4], 0
    // Predicated region
    $region2: #{tpu_custom_call.1} parent=1 // pred_check
      _
    $region3: #{tpu_custom_call.1} parent=1 // pred_check_branch
      %11 = sbr.rel (0) target = $region5
    $region4: #{tpu_custom_call.1} parent=1 // pred_region
      %s13 = ssub.s32 128, 128
      %14 = vsyncadd [#allocation3], %s13
      %s16 = sshll.u32 [#allocation2], 4
      %s17 = int_to_ptr.vmem [resolvable:$true] %s16
      %19 = dma.hbm_to_vmem [thread:$0]  %s0, 128, %s17, [#allocation3]
    $region5: #{tpu_custom_call.1} parent=1 // pred_fallthru
      _
    // Predicated region
    $region6: #{tpu_custom_call.1} parent=1 // pred_check
      _
    $region7: #{tpu_custom_call.1} parent=1 // pred_check_branch
      %21 = sbr.rel (0) target = $region9
    $region8: #{tpu_custom_call.1} parent=1 // pred_region
      %s23 = ssub.s32 512, 512
      %24 = vsyncadd [#allocation6], %s23
      %s25 = sshll.u32 [#allocation5], 4
      %s26 = int_to_ptr.vmem [resolvable:$true] %s25
      %31 = dma.hbm_to_vmem [thread:$0]  %s1, 512, %s26, [#allocation6], 128, 128, 8
    $region9: #{tpu_custom_call.1} parent=1 // pred_fallthru
      _
    // Predicated region
    $region10: #{tpu_custom_call.1} parent=1 // pred_check
      _
    $region11: #{tpu_custom_call.1} parent=1 // pred_check_branch
      %33 = sbr.rel (0) target = $region13
    $region12: #{tpu_custom_call.1} parent=1 // pred_region
      %34 = dma.done [#allocation3], 128
    $region13: #{tpu_custom_call.1} parent=1 // pred_fallthru
      _
    // Predicated region
    $region14: #{tpu_custom_call.1} parent=1 // pred_check
      _
    $region15: #{tpu_custom_call.1} parent=1 // pred_check_branch
      %36 = sbr.rel (0) target = $region17
    $region16: #{tpu_custom_call.1} parent=1 // pred_region
      %37 = dma.done [#allocation6], 512
    $region17: #{tpu_custom_call.1} parent=1 // pred_fallthru
      _
    %v38 = vld [vmem:[#allocation2] sm:$0xff]
    %v39 = vmul.f32 %v38, 48.0
    %v40 = vcvt.f32.s32.to.zero.pseudo %v39
    %vm41 = vcmp.gt.s32.totalorder %v40, 0
    %v42 = vsel %vm41, %v40, 0
    %vm43 = vcmp.lt.s32.totalorder %v42, 47
    %v44 = vsel %vm43, %v42, 47
    %v45 = vcvt.f32.s32.to.zero.pseudo %v38
    %vm46 = vcmp.gt.s32.totalorder %v45, 0
    %v47 = vsel %vm46, %v45, 0
    %vm48 = vcmp.lt.s32.totalorder %v47, 6
    %v49 = vsel %vm48, %v47, 6
    %v50 = vadd.s32 %v49, 48
    %v51 = vlaneseq
    %v52 = vshrl.u32 %v51, 7
    %v53 = vadd.s32 %v52, 8
    %v54 = vadd.s32 %v52, 16
    %v55 = vadd.s32 %v52, 24
    %v56 = vadd.s32 %v52, 32
    %v57 = vadd.s32 %v52, 40
    %v58 = vadd.s32 %v52, 48
    %v59 = vlaneseq
    %v60 = vshrl.u32 %v59, 7
    %v61 = vsub.s32 0, %v60
    %v62 = vrot.slane %v44, %v61
    %v63 = vlaneseq
    %v64 = vshrl.u32 %v63, 7
    %v65 = vsub.s32 2, %v64
    %v66 = vrot.slane %v44, %v65
    %v67 = vlaneseq
    %v68 = vshrl.u32 %v67, 7
    %v69 = vsub.s32 4, %v68
    %v70 = vrot.slane %v44, %v69
    %v71 = vlaneseq
    %v72 = vshrl.u32 %v71, 7
    %v73 = vsub.s32 6, %v72
    %v74 = vrot.slane %v44, %v73
    %v75 = vlaneseq
    %v76 = vshrl.u32 %v75, 7
    %v77 = vsub.s32 0, %v76
    %v78 = vrot.slane %v62, %v77
    %v79 = vlaneseq
    %v80 = vshrl.u32 %v79, 7
    %v81 = vsub.s32 0, %v80
    %v82 = vrot.slane %v66, %v81
    %v83 = vlaneseq
    %v84 = vshrl.u32 %v83, 7
    %v85 = vsub.s32 0, %v84
    %v86 = vrot.slane %v70, %v85
    %v87 = vlaneseq
    %v88 = vshrl.u32 %v87, 7
    %v89 = vsub.s32 0, %v88
    %v90 = vrot.slane %v74, %v89
    %vm91 = vcmp.eq.s32.totalorder %v52, %v78
    %vm92 = vcmp.eq.s32.totalorder %v52, %v82
    %vm93 = vcmp.eq.s32.totalorder %v52, %v86
    %vm94 = vcmp.eq.s32.totalorder %v52, %v90
    %vm95 = vcmp.eq.s32.totalorder %v53, %v78
    %vm96 = vcmp.eq.s32.totalorder %v53, %v82
    %vm97 = vcmp.eq.s32.totalorder %v53, %v86
    %vm98 = vcmp.eq.s32.totalorder %v53, %v90
    %vm99 = vcmp.eq.s32.totalorder %v54, %v78
    %vm100 = vcmp.eq.s32.totalorder %v54, %v82
    %vm101 = vcmp.eq.s32.totalorder %v54, %v86
    %vm102 = vcmp.eq.s32.totalorder %v54, %v90
    %vm103 = vcmp.eq.s32.totalorder %v55, %v78
    %vm104 = vcmp.eq.s32.totalorder %v55, %v82
    %vm105 = vcmp.eq.s32.totalorder %v55, %v86
    %vm106 = vcmp.eq.s32.totalorder %v55, %v90
    %vm107 = vcmp.eq.s32.totalorder %v56, %v78
    %vm108 = vcmp.eq.s32.totalorder %v56, %v82
    %vm109 = vcmp.eq.s32.totalorder %v56, %v86
    %vm110 = vcmp.eq.s32.totalorder %v56, %v90
    %vm111 = vcmp.eq.s32.totalorder %v57, %v78
    %vm112 = vcmp.eq.s32.totalorder %v57, %v82
    %vm113 = vcmp.eq.s32.totalorder %v57, %v86
    %vm114 = vcmp.eq.s32.totalorder %v57, %v90
    %vm115 = vcmp.eq.s32.totalorder %v58, %v78
    %vm116 = vcmp.eq.s32.totalorder %v58, %v82
    %vm117 = vcmp.eq.s32.totalorder %v58, %v86
    %vm118 = vcmp.eq.s32.totalorder %v58, %v90
    %v119 = vlaneseq
    %v120 = vshrl.u32 %v119, 7
    %v121 = vsub.s32 1, %v120
    %v122 = vrot.slane %v50, %v121
    %v123 = vlaneseq
    %v124 = vshrl.u32 %v123, 7
    %v125 = vsub.s32 3, %v124
    %v126 = vrot.slane %v50, %v125
    %v127 = vlaneseq
    %v128 = vshrl.u32 %v127, 7
    %v129 = vsub.s32 5, %v128
    %v130 = vrot.slane %v50, %v129
    %v131 = vlaneseq
    %v132 = vshrl.u32 %v131, 7
    %v133 = vsub.s32 7, %v132
    %v134 = vrot.slane %v50, %v133
    %v135 = vlaneseq
    %v136 = vshrl.u32 %v135, 7
    %v137 = vsub.s32 1, %v136
    %v138 = vrot.slane %v122, %v137
    %v139 = vlaneseq
    %v140 = vshrl.u32 %v139, 7
    %v141 = vsub.s32 1, %v140
    %v142 = vrot.slane %v126, %v141
    %v143 = vlaneseq
    %v144 = vshrl.u32 %v143, 7
    %v145 = vsub.s32 1, %v144
    %v146 = vrot.slane %v130, %v145
    %v147 = vlaneseq
    %v148 = vshrl.u32 %v147, 7
    %v149 = vsub.s32 1, %v148
    %v150 = vrot.slane %v134, %v149
    %vm151 = vcmp.eq.s32.totalorder %v52, %v138
    %vm152 = vcmp.eq.s32.totalorder %v52, %v142
    %vm153 = vcmp.eq.s32.totalorder %v52, %v146
    %vm154 = vcmp.eq.s32.totalorder %v52, %v150
    %vm155 = vcmp.eq.s32.totalorder %v53, %v138
    %vm156 = vcmp.eq.s32.totalorder %v53, %v142
    %vm157 = vcmp.eq.s32.totalorder %v53, %v146
    %vm158 = vcmp.eq.s32.totalorder %v53, %v150
    %vm159 = vcmp.eq.s32.totalorder %v54, %v138
    %vm160 = vcmp.eq.s32.totalorder %v54, %v142
    %vm161 = vcmp.eq.s32.totalorder %v54, %v146
    %vm162 = vcmp.eq.s32.totalorder %v54, %v150
    %vm163 = vcmp.eq.s32.totalorder %v55, %v138
    %vm164 = vcmp.eq.s32.totalorder %v55, %v142
    %vm165 = vcmp.eq.s32.totalorder %v55, %v146
    %vm166 = vcmp.eq.s32.totalorder %v55, %v150
    %vm167 = vcmp.eq.s32.totalorder %v56, %v138
    %vm168 = vcmp.eq.s32.totalorder %v56, %v142
    %vm169 = vcmp.eq.s32.totalorder %v56, %v146
    %vm170 = vcmp.eq.s32.totalorder %v56, %v150
    %vm171 = vcmp.eq.s32.totalorder %v57, %v138
    %vm172 = vcmp.eq.s32.totalorder %v57, %v142
    %vm173 = vcmp.eq.s32.totalorder %v57, %v146
    %vm174 = vcmp.eq.s32.totalorder %v57, %v150
    %vm175 = vcmp.eq.s32.totalorder %v58, %v138
    %vm176 = vcmp.eq.s32.totalorder %v58, %v142
    %vm177 = vcmp.eq.s32.totalorder %v58, %v146
    %vm178 = vcmp.eq.s32.totalorder %v58, %v150
    %vm179 = vmor %vm91, %vm151
    %vm180 = vmor %vm92, %vm152
    %vm181 = vmor %vm93, %vm153
    %vm182 = vmor %vm94, %vm154
    %vm183 = vmor %vm95, %vm155
    %vm184 = vmor %vm96, %vm156
    %vm185 = vmor %vm97, %vm157
    %vm186 = vmor %vm98, %vm158
    %vm187 = vmor %vm99, %vm159
    %vm188 = vmor %vm100, %vm160
    %vm189 = vmor %vm101, %vm161
    %vm190 = vmor %vm102, %vm162
    %vm191 = vmor %vm103, %vm163
    %vm192 = vmor %vm104, %vm164
    %vm193 = vmor %vm105, %vm165
    %vm194 = vmor %vm106, %vm166
    %vm195 = vmor %vm107, %vm167
    %vm196 = vmor %vm108, %vm168
    %vm197 = vmor %vm109, %vm169
    %vm198 = vmor %vm110, %vm170
    %vm199 = vmor %vm111, %vm171
    %vm200 = vmor %vm112, %vm172
    %vm201 = vmor %vm113, %vm173
    %vm202 = vmor %vm114, %vm174
    %vm203 = vmor %vm115, %vm175
    %vm204 = vmor %vm116, %vm176
    %vm205 = vmor %vm117, %vm177
    %vm206 = vmor %vm118, %vm178
    %v207 = vsel %vm179, 1, 0
    %v208 = vsel %vm180, 1, 0
    %v209 = vsel %vm181, 1, 0
    %v210 = vsel %vm182, 1, 0
    %v211 = vsel %vm183, 1, 0
    %v212 = vsel %vm184, 1, 0
    %v213 = vsel %vm185, 1, 0
    %v214 = vsel %vm186, 1, 0
    %v215 = vsel %vm187, 1, 0
    %v216 = vsel %vm188, 1, 0
    %v217 = vsel %vm189, 1, 0
    %v218 = vsel %vm190, 1, 0
    %v219 = vsel %vm191, 1, 0
    %v220 = vsel %vm192, 1, 0
    %v221 = vsel %vm193, 1, 0
    %v222 = vsel %vm194, 1, 0
    %v223 = vsel %vm195, 1, 0
    %v224 = vsel %vm196, 1, 0
    %v225 = vsel %vm197, 1, 0
    %v226 = vsel %vm198, 1, 0
    %v227 = vsel %vm199, 1, 0
    %v228 = vsel %vm200, 1, 0
    %v229 = vsel %vm201, 1, 0
    %v230 = vsel %vm202, 1, 0
    %v231 = vsel %vm203, 1, 0
    %v232 = vsel %vm204, 1, 0
    %v233 = vsel %vm205, 1, 0
    %v234 = vsel %vm206, 1, 0
    %v235 = vcvt.s32.f32 %v207
    %v236 = vcvt.s32.f32 %v208
    %v237 = vcvt.s32.f32 %v209
    %v238 = vcvt.s32.f32 %v210
    %v239 = vcvt.s32.f32 %v211
    %v240 = vcvt.s32.f32 %v212
    %v241 = vcvt.s32.f32 %v213
    %v242 = vcvt.s32.f32 %v214
    %v243 = vcvt.s32.f32 %v215
    %v244 = vcvt.s32.f32 %v216
    %v245 = vcvt.s32.f32 %v217
    %v246 = vcvt.s32.f32 %v218
    %v247 = vcvt.s32.f32 %v219
    %v248 = vcvt.s32.f32 %v220
    %v249 = vcvt.s32.f32 %v221
    %v250 = vcvt.s32.f32 %v222
    %v251 = vcvt.s32.f32 %v223
    %v252 = vcvt.s32.f32 %v224
    %v253 = vcvt.s32.f32 %v225
    %v254 = vcvt.s32.f32 %v226
    %v255 = vcvt.s32.f32 %v227
    %v256 = vcvt.s32.f32 %v228
    %v257 = vcvt.s32.f32 %v229
    %v258 = vcvt.s32.f32 %v230
    %v259 = vcvt.s32.f32 %v231
    %v260 = vcvt.s32.f32 %v232
    %v261 = vcvt.s32.f32 %v233
    %v262 = vcvt.s32.f32 %v234
    %v263 = vld [vmem:[#allocation5] sm:$0xff]
    %v264 = vld [vmem:[#allocation5 + $0x8] sm:$0xff]
    %v265 = vld [vmem:[#allocation5 + $0x10] sm:$0xff]
    %v266 = vld [vmem:[#allocation5 + $0x18] sm:$0xff]
    %vm267 = vcmask 457728
    %v269 = vsel %vm267, %v263, 0
    %v272 = vsel %vm267, %v264, 0
    %v275 = vsel %vm267, %v265, 0
    %v278 = vsel %vm267, %v266, 0
    %280 = vmatprep.subr.mxu0 %v236
    %281 = vmatpush1.msra.mxu0 %v235
    %282 = vmatprep.subr.mxu0 %v240
    %283 = vmatpush1.msra.mxu0 %v239
    %284 = vmatprep.subr.mxu0 %v244
    %285 = vmatpush1.msra.mxu0 %v243
    %286 = vmatprep.subr.mxu0 %v248
    %287 = vmatpush1.msra.mxu0 %v247
    %288 = vmatprep.subr.mxu0 %v252
    %289 = vmatpush1.msra.mxu0 %v251
    %290 = vmatprep.subr.mxu0 %v256
    %291 = vmatpush1.msra.mxu0 %v255
    %292 = vmatprep.subr.mxu0 %v260
    %293 = vmatpush1.msra.mxu0 %v259
    %294 = vmatprep.subr.mxu0 0.0
    %295 = vmatpush1.msra.mxu0 0.0
    %296 = vmatprep.subr.mxu0 0.0
    %297 = vmatpush1.msra.mxu0 0.0
    %298 = vmatprep.subr.mxu0 0.0
    %299 = vmatpush1.msra.mxu0 0.0
    %300 = vmatprep.subr.mxu0 0.0
    %301 = vmatpush1.msra.mxu0 0.0
    %302 = vmatprep.subr.mxu0 0.0
    %303 = vmatpush1.msra.mxu0 0.0
    %304 = vmatprep.subr.mxu0 0.0
    %305 = vmatpush1.msra.mxu0 0.0
    %306 = vmatprep.subr.mxu0 0.0
    %307 = vmatpush1.msra.mxu0 0.0
    %308 = vmatprep.subr.mxu0 0.0
    %309 = vmatpush1.msra.mxu0 0.0
    %310 = vmatprep.subr.mxu0 0.0
    %311 = vmatpush1.msra.mxu0 0.0
    %312 = vmatprep.subr.mxu0 0.0
    %313 = vmatpush1.msra.mxu0 0.0
    %314 = vmatprep.subr.mxu0 0.0
    %315 = vmatpush1.msra.mxu0 0.0
    %316 = vmatprep.subr.mxu0 0.0
    %317 = vmatpush1.msra.mxu0 0.0
    %318 = vmatprep.subr.mxu0 0.0
    %319 = vmatpush1.msra.mxu0 0.0
    %320 = vmatprep.subr.mxu0 0.0
    %321 = vmatpush1.msra.mxu0 0.0
    %322 = vmatprep.subr.mxu0 0.0
    %323 = vmatpush1.msra.mxu0 0.0
    %324 = vmatprep.subr.mxu0 0.0
    %325 = vmatpush1.msra.mxu0 0.0
    %326 = vmatprep.subr.mxu0 0.0
    %327 = vmatpush1.msra.mxu0 0.0
    %328 = vmatprep.subr.mxu0 0.0
    %329 = vmatpush1.msra.mxu0 0.0
    %330 = vmatprep.subr.mxu0 0.0
    %331 = vmatpush1.msra.mxu0 0.0
    %332 = vmatprep.subr.mxu0 0.0
    %333 = vmatpush1.msra.mxu0 0.0
    %334 = vmatprep.subr.mxu0 0.0
    %335 = vmatpush1.msra.mxu0 0.0
    %336 = vmatprep.subr.mxu0 0.0
    %337 = vmatpush1.msra.mxu0 0.0
    %338 = vmatprep.subr.mxu0 0.0
    %339 = vmatpush1.msra.mxu0 0.0
    %340 = vmatprep.subr.mxu0 0.0
    %341 = vmatpush1.msra.mxu0 0.0
    %342 = vmatprep.subr.mxu0 0.0
    %343 = vmatpush1.msra.mxu0 0.0
    %344 = vmatprep.mubr.f32.mxu0 0.0
    %345 = vmatmul.mubr.f32.gmra.mrb[0].mxu0 %v269
    %v346 = vpop.f32.mrb[0].mxu0
    %v347 = vadd.f32 0.0, %v346
    %v348 = vpop.f32.mrb[0].mxu0
    %v349 = vadd.f32 0.0, %v348
    %350 = vmatprep.mubr.f32.mxu0 0.0
    %351 = vmatmul.mubr.f32.gmra.mrb[0].mxu0 %v272
    %v352 = vpop.f32.mrb[0].mxu0
    %v353 = vadd.f32 0.0, %v352
    %v354 = vpop.f32.mrb[0].mxu0
    %v355 = vadd.f32 0.0, %v354
    %356 = vmatprep.mubr.f32.mxu0 0.0
    %357 = vmatmul.mubr.f32.gmra.mrb[0].mxu0 %v275
    %v358 = vpop.f32.mrb[0].mxu0
    %v359 = vadd.f32 0.0, %v358
    %v360 = vpop.f32.mrb[0].mxu0
    %v361 = vadd.f32 0.0, %v360
    %362 = vmatprep.mubr.f32.mxu0 0.0
    %363 = vmatmul.mubr.f32.gmra.mrb[0].mxu0 %v278
    %v364 = vpop.f32.mrb[0].mxu0
    %v365 = vadd.f32 0.0, %v364
    %v366 = vpop.f32.mrb[0].mxu0
    %v367 = vadd.f32 0.0, %v366
    %368 = vdwg.mxu0
    %369 = vmatprep.subr.mxu0 %v238
    %370 = vmatpush1.msra.mxu0 %v237
    %371 = vmatprep.subr.mxu0 %v242
    %372 = vmatpush1.msra.mxu0 %v241
    %373 = vmatprep.subr.mxu0 %v246
    %374 = vmatpush1.msra.mxu0 %v245
    %375 = vmatprep.subr.mxu0 %v250
    %376 = vmatpush1.msra.mxu0 %v249
    %377 = vmatprep.subr.mxu0 %v254
    %378 = vmatpush1.msra.mxu0 %v253
    %379 = vmatprep.subr.mxu0 %v258
    %380 = vmatpush1.msra.mxu0 %v257
    %381 = vmatprep.subr.mxu0 %v262
    %382 = vmatpush1.msra.mxu0 %v261
    %383 = vmatprep.subr.mxu0 0.0
    %384 = vmatpush1.msra.mxu0 0.0
    %385 = vmatprep.subr.mxu0 0.0
    %386 = vmatpush1.msra.mxu0 0.0
    %387 = vmatprep.subr.mxu0 0.0
    %388 = vmatpush1.msra.mxu0 0.0
    %389 = vmatprep.subr.mxu0 0.0
    %390 = vmatpush1.msra.mxu0 0.0
    %391 = vmatprep.subr.mxu0 0.0
    %392 = vmatpush1.msra.mxu0 0.0
    %393 = vmatprep.subr.mxu0 0.0
    %394 = vmatpush1.msra.mxu0 0.0
    %395 = vmatprep.subr.mxu0 0.0
    %396 = vmatpush1.msra.mxu0 0.0
    %397 = vmatprep.subr.mxu0 0.0
    %398 = vmatpush1.msra.mxu0 0.0
    %399 = vmatprep.subr.mxu0 0.0
    %400 = vmatpush1.msra.mxu0 0.0
    %401 = vmatprep.subr.mxu0 0.0
    %402 = vmatpush1.msra.mxu0 0.0
    %403 = vmatprep.subr.mxu0 0.0
    %404 = vmatpush1.msra.mxu0 0.0
    %405 = vmatprep.subr.mxu0 0.0
    %406 = vmatpush1.msra.mxu0 0.0
    %407 = vmatprep.subr.mxu0 0.0
    %408 = vmatpush1.msra.mxu0 0.0
    %409 = vmatprep.subr.mxu0 0.0
    %410 = vmatpush1.msra.mxu0 0.0
    %411 = vmatprep.subr.mxu0 0.0
    %412 = vmatpush1.msra.mxu0 0.0
    %413 = vmatprep.subr.mxu0 0.0
    %414 = vmatpush1.msra.mxu0 0.0
    %415 = vmatprep.subr.mxu0 0.0
    %416 = vmatpush1.msra.mxu0 0.0
    %417 = vmatprep.subr.mxu0 0.0
    %418 = vmatpush1.msra.mxu0 0.0
    %419 = vmatprep.subr.mxu0 0.0
    %420 = vmatpush1.msra.mxu0 0.0
    %421 = vmatprep.subr.mxu0 0.0
    %422 = vmatpush1.msra.mxu0 0.0
    %423 = vmatprep.subr.mxu0 0.0
    %424 = vmatpush1.msra.mxu0 0.0
    %425 = vmatprep.subr.mxu0 0.0
    %426 = vmatpush1.msra.mxu0 0.0
    %427 = vmatprep.subr.mxu0 0.0
    %428 = vmatpush1.msra.mxu0 0.0
    %429 = vmatprep.subr.mxu0 0.0
    %430 = vmatpush1.msra.mxu0 0.0
    %431 = vmatprep.subr.mxu0 0.0
    %432 = vmatpush1.msra.mxu0 0.0
    %433 = vmatprep.mubr.f32.mxu0 0.0
    %434 = vmatmul.mubr.f32.gmra.mrb[0].mxu0 %v269
    %v435 = vpop.f32.mrb[0].mxu0
    %v436 = vadd.f32 0.0, %v435
    %v437 = vpop.f32.mrb[0].mxu0
    %v438 = vadd.f32 0.0, %v437
    %439 = vmatprep.mubr.f32.mxu0 0.0
    %440 = vmatmul.mubr.f32.gmra.mrb[0].mxu0 %v272
    %v441 = vpop.f32.mrb[0].mxu0
    %v442 = vadd.f32 0.0, %v441
    %v443 = vpop.f32.mrb[0].mxu0
    %v444 = vadd.f32 0.0, %v443
    %445 = vmatprep.mubr.f32.mxu0 0.0
    %446 = vmatmul.mubr.f32.gmra.mrb[0].mxu0 %v275
    %v447 = vpop.f32.mrb[0].mxu0
    %v448 = vadd.f32 0.0, %v447
    %v449 = vpop.f32.mrb[0].mxu0
    %v450 = vadd.f32 0.0, %v449
    %451 = vmatprep.mubr.f32.mxu0 0.0
    %452 = vmatmul.mubr.f32.gmra.mrb[0].mxu0 %v278
    %v453 = vpop.f32.mrb[0].mxu0
    %v454 = vadd.f32 0.0, %v453
    %v455 = vpop.f32.mrb[0].mxu0
    %v456 = vadd.f32 0.0, %v455
    %457 = vdwg.mxu0
    %458 = vst [vmem:[#allocation7] sm:$0xff] %v347
    %459 = vst [vmem:[#allocation7 + $0x8] sm:$0xff] %v349
    %460 = vst [vmem:[#allocation7 + $0x10] sm:$0xff] %v436
    %461 = vst [vmem:[#allocation7 + $0x18] sm:$0xff] %v438
    %462 = vst [vmem:[#allocation7 + $0x20] sm:$0xff] %v353
    %463 = vst [vmem:[#allocation7 + $0x28] sm:$0xff] %v355
    %464 = vst [vmem:[#allocation7 + $0x30] sm:$0xff] %v442
    %465 = vst [vmem:[#allocation7 + $0x38] sm:$0xff] %v444
    %466 = vst [vmem:[#allocation7 + $0x40] sm:$0xff] %v359
    %467 = vst [vmem:[#allocation7 + $0x48] sm:$0xff] %v361
    %468 = vst [vmem:[#allocation7 + $0x50] sm:$0xff] %v448
    %469 = vst [vmem:[#allocation7 + $0x58] sm:$0xff] %v450
    %470 = vst [vmem:[#allocation7 + $0x60] sm:$0xff] %v365
    %471 = vst [vmem:[#allocation7 + $0x68] sm:$0xff] %v367
    %472 = vst [vmem:[#allocation7 + $0x70] sm:$0xff] %v454
    %473 = vst [vmem:[#allocation7 + $0x78] sm:$0xff] %v456
    // Predicated region
    $region18: #{tpu_custom_call.1} parent=1 // pred_check
      _
    $region19: #{tpu_custom_call.1} parent=1 // pred_check_branch
      %475 = sbr.rel (0) target = $region21
    $region20: #{tpu_custom_call.1} parent=1 // pred_region
      %s477 = ssub.s32 2048, 2048
      %478 = vsyncadd [#allocation4], %s477
      %s479 = sshll.u32 [#allocation7], 4
      %s480 = int_to_ptr.vmem [resolvable:$true] %s479
      %485 = dma.vmem_to_hbm [thread:$0]  %s480, 2048, %s2, [#allocation4], 512, 512, 32
    $region21: #{tpu_custom_call.1} parent=1 // pred_fallthru
      _
    // Predicated region
    $region22: #{tpu_custom_call.1} parent=1 // pred_check
      _
    $region23: #{tpu_custom_call.1} parent=1 // pred_check_branch
      %487 = sbr.rel (0) target = $region25
    $region24: #{tpu_custom_call.1} parent=1 // pred_region
      %488 = dma.done [#allocation4], 2048
    $region25: #{tpu_custom_call.1} parent=1 // pred_fallthru
      _
    %489 = vsyncpa [#allocation3], 1
    %490 = vsyncpa [#allocation6], 1
    %491 = vsyncpa [#allocation4], 1

</llo_original>
